<compile_context>
chip_gen: v7x
topology: tpu7x:2x2x1
jax: 0.10.0
libtpu: 0.0.40
codegen_flags: <defaults>
</compile_context>

<pallas_src>
import jax
import jax.numpy as jnp
from jax.experimental import pallas as pl
from jax.experimental.pallas import tpu as pltpu

LANE = 128


def _round_up(v, m):
    return (v + m - 1) // m * m


# ----------------------------- kernel -------------------------------------- #

def _gcn_fused_kernel(a_ref, xw1_ref, b1_ref, w2_ref, b2_ref, o_ref):
    # a_ref:   (Np, Np)  bf16  normalized adjacency  (padded rows/cols are 0)
    # xw1_ref: (Np, Hp)  bf16  pre-computed x @ W1   (padded rows/cols are 0)
    # b1_ref:  (1, Hp)   f32
    # w2_ref:  (Hp, Cop) f32
    # b2_ref:  (1, Cop)  f32
    # o_ref:   (Np, Cop) f32
    a = a_ref[...]

    # Layer 1: h = relu(Â (x W1) + b1), f32 accumulation on the MXU.
    h = jnp.maximum(
        jnp.dot(a, xw1_ref[...], preferred_element_type=jnp.float32)
        + b1_ref[...],
        0.0)

    # NOTE: padded rows of h equal relu(b1) (not 0).  They are annihilated by
    # the zero padded *columns* of Â (Â[:N, N:] == 0) in the aggregation
    # below, so the first N output rows stay exact.

    # Layer 2: out = sigmoid(Â (h W2) + b2).  h@W2 is tiny -> keep it f32;
    # the big Â matmul again uses bf16 operands with f32 accumulation.
    hw2 = jnp.dot(h, w2_ref[...], preferred_element_type=jnp.float32)
    o = jnp.dot(a, hw2.astype(jnp.bfloat16),
                preferred_element_type=jnp.float32) + b2_ref[...]
    o_ref[...] = jax.nn.sigmoid(o)


# ----------------------------- wrapper ------------------------------------- #

def _fused_gcn_call(a_p, xw1_p, b1_p, w2_p, b2_p):
    """Single-grid-step fused pallas_call on padded, lane-dense operands."""
    Np = a_p.shape[0]
    Hp = xw1_p.shape[1]
    Cop = w2_p.shape[1]
    return pl.pallas_call(
        _gcn_fused_kernel,
        out_shape=jax.ShapeDtypeStruct((Np, Cop), jnp.float32),
        grid=(1,),
        in_specs=[
            pl.BlockSpec((Np, Np), lambda i: (0, 0)),   # Â (bf16)
            pl.BlockSpec((Np, Hp), lambda i: (0, 0)),   # x @ W1 (bf16)
            pl.BlockSpec((1, Hp), lambda i: (0, 0)),    # b1
            pl.BlockSpec((Hp, Cop), lambda i: (0, 0)),  # W2
            pl.BlockSpec((1, Cop), lambda i: (0, 0)),   # b2
        ],
        out_specs=pl.BlockSpec((Np, Cop), lambda i: (0, 0)),
        compiler_params=pltpu.CompilerParams(
            dimension_semantics=("arbitrary",)),
    )(a_p, xw1_p, b1_p, w2_p, b2_p)


def make_gcn_forward(a_hat, w1, b1, w2, b2):
    """Pads Â and the parameters ONCE and returns a jitted forward(x).

    a_hat: (N, N) f32 normalized adjacency, w1: (Cin, H), b1: (1, H) or (H,),
    w2: (H, Cout), b2: (1, Cout) or (Cout,).  forward(x) -> (N, Cout) f32.
    """
    N = a_hat.shape[0]
    Cin, H = w1.shape
    Cout = w2.shape[1]

    Np = _round_up(N, LANE)
    Hp = _round_up(H, LANE)
    Cop = _round_up(Cout, LANE)

    f32, bf16 = jnp.float32, jnp.bfloat16

    # One-time padding / casting (hoisted out of the per-forward path).
    a_p = jnp.zeros((Np, Np), bf16).at[:N, :N].set(a_hat.astype(bf16))
    b1_p = jnp.zeros((1, Hp), f32).at[:, :H].set(
        b1.astype(f32).reshape(1, H))
    w2_p = jnp.zeros((Hp, Cop), f32).at[:H, :Cout].set(w2.astype(f32))
    b2_p = jnp.zeros((1, Cop), f32).at[:, :Cout].set(
        b2.astype(f32).reshape(1, Cout))
    w1_f32 = w1.astype(f32)

    @jax.jit
    def forward(x):
        # Hoisted grid-invariant matmul on UNPADDED shapes: (N,Cin)@(Cin,H).
        xw1 = x.astype(f32) @ w1_f32
        xw1_p = jnp.zeros((Np, Hp), bf16).at[:N, :H].set(xw1.astype(bf16))
        out_p = _fused_gcn_call(a_p, xw1_p, b1_p, w2_p, b2_p)
        return out_p[:N, :Cout]

    return forward


# ------------------------- host-side glue / reference ---------------------- #

def build_normalized_adjacency(edge_src, edge_dst, num_nodes):
    """Dense Â = D^{-1/2}(A + I)D^{-1/2} from an undirected edge list (glue)."""
    a = jnp.zeros((num_nodes, num_nodes), jnp.float32)
    a = a.at[edge_src, edge_dst].set(1.0)
    a = a.at[edge_dst, edge_src].set(1.0)          # undirected graph
    diag = jnp.arange(num_nodes)
    a = a.at[diag, diag].set(1.0)                  # add self-loops
    deg = a.sum(axis=1)
    d_inv_sqrt = 1.0 / jnp.sqrt(deg)
    return d_inv_sqrt[:, None] * a * d_inv_sqrt[None, :]


def gcn_reference(a_hat, x, w1, b1, w2, b2):
    h = jnp.maximum(a_hat @ (x @ w1) + b1, 0.0)
    return jax.nn.sigmoid(a_hat @ (h @ w2) + b2)


if __name__ == "__main__":
    # Shapes consistent with the module: 200-node / 400-edge random graph,
    # in_channels -> 16 -> out_channels.
    N = 200
    E = 400
    IN_CHANNELS = 8
    HIDDEN = 16       # fixed by the module definition
    OUT_CHANNELS = 8

    key = jax.random.PRNGKey(0)
    k_src, k_dst, k_x, k_w1, k_w2 = jax.random.split(key, 5)

    # Deterministic synthetic random graph (replaces nx.gnm_random_graph).
    edge_src = jax.random.randint(k_src, (E,), 0, N)
    edge_dst = jax.random.randint(k_dst, (E,), 0, N)
    a_hat = build_normalized_adjacency(edge_src, edge_dst, N)

    # Node features and deterministic parameter init (glorot-ish scaling).
    x = jax.random.normal(k_x, (N, IN_CHANNELS), jnp.float32)
    w1 = jax.random.normal(k_w1, (IN_CHANNELS, HIDDEN), jnp.float32) * (
        1.0 / jnp.sqrt(IN_CHANNELS))
    b1 = jnp.zeros((1, HIDDEN), jnp.float32)
    w2 = jax.random.normal(k_w2, (HIDDEN, OUT_CHANNELS), jnp.float32) * (
        1.0 / jnp.sqrt(HIDDEN))
    b2 = jnp.zeros((1, OUT_CHANNELS), jnp.float32)

    forward = make_gcn_forward(a_hat, w1, b1, w2, b2)
    out = forward(x)
    out = jax.block_until_ready(out)

    ref = gcn_reference(a_hat, x, w1, b1, w2, b2)
    assert out.shape == (N, OUT_CHANNELS)
    # Tolerance loosened because the dominant Â matmuls run in bf16 (with f32
    # accumulation); sigmoid-bounded outputs keep the absolute error small.
    assert jnp.allclose(out, ref, atol=3e-2, rtol=3e-2)

    print("KERNEL_OK")
</pallas_src>

<mosaic_0001>
module attributes {stable_mosaic.version = 11 : i64} {
  func.func @_gcn_fused_kernel(%arg0: i32, %arg1: memref<256x256xbf16, #tpu.memory_space<vmem>>, %arg2: memref<256x128xbf16, #tpu.memory_space<vmem>>, %arg3: memref<1x128xf32, #tpu.memory_space<vmem>>, %arg4: memref<128x128xf32, #tpu.memory_space<vmem>>, %arg5: memref<1x128xf32, #tpu.memory_space<vmem>>, %arg6: memref<256x128xf32, #tpu.memory_space<vmem>>) attributes {dimension_semantics = [#tpu.dimension_semantics<arbitrary>], iteration_bounds = array<i64: 1>, scalar_prefetch = 0 : i64, scratch_operands = 0 : i64, tpu.core_type = #tpu.core_type<tc>, window_params = [{pipeline_mode = #tpu.pipeline_mode<synchronous>, transform_indices = @transform_0, window_bounds = array<i64: 256, 256>}, {pipeline_mode = #tpu.pipeline_mode<synchronous>, transform_indices = @transform_1, window_bounds = array<i64: 256, 128>}, {pipeline_mode = #tpu.pipeline_mode<synchronous>, transform_indices = @transform_2, window_bounds = array<i64: 1, 128>}, {pipeline_mode = #tpu.pipeline_mode<synchronous>, transform_indices = @transform_3, window_bounds = array<i64: 128, 128>}, {pipeline_mode = #tpu.pipeline_mode<synchronous>, transform_indices = @transform_4, window_bounds = array<i64: 1, 128>}, {pipeline_mode = #tpu.pipeline_mode<synchronous>, transform_indices = @transform_5, window_bounds = array<i64: 256, 128>}]} {
    %c0 = arith.constant 0 : index
    %c0_0 = arith.constant 0 : index
    %0 = vector.load %arg1[%c0, %c0_0] : memref<256x256xbf16, #tpu.memory_space<vmem>>, vector<256x256xbf16>
    %c0_1 = arith.constant 0 : index
    %c0_2 = arith.constant 0 : index
    %1 = vector.load %arg2[%c0_1, %c0_2] : memref<256x128xbf16, #tpu.memory_space<vmem>>, vector<256x128xbf16>
    %cst = arith.constant dense<0.000000e+00> : vector<256x128xf32>
    %2 = tpu.matmul %0, %1, %cst {dimension_numbers = #tpu.dot_dimension_numbers<[1], [0], [0], [1], [0, 0, 1, 1], [], []>} : vector<256x256xbf16>, vector<256x128xbf16>, vector<256x128xf32> -> vector<256x128xf32>
    %c0_3 = arith.constant 0 : index
    %c0_4 = arith.constant 0 : index
    %3 = vector.load %arg3[%c0_3, %c0_4] : memref<1x128xf32, #tpu.memory_space<vmem>>, vector<1x128xf32>
    %4 = vector.broadcast %3 : vector<1x128xf32> to vector<256x128xf32>
    %5 = arith.addf %2, %4 : vector<256x128xf32>
    %cst_5 = arith.constant 0.000000e+00 : f32
    %6 = vector.broadcast %cst_5 : f32 to vector<256x128xf32>
    %7 = arith.maximumf %5, %6 : vector<256x128xf32>
    %c0_6 = arith.constant 0 : index
    %c0_7 = arith.constant 0 : index
    %8 = vector.load %arg4[%c0_6, %c0_7] : memref<128x128xf32, #tpu.memory_space<vmem>>, vector<128x128xf32>
    %cst_8 = arith.constant dense<0.000000e+00> : vector<256x128xf32>
    %9 = tpu.matmul %7, %8, %cst_8 {dimension_numbers = #tpu.dot_dimension_numbers<[1], [0], [0], [1], [0, 0, 1, 1], [], []>} : vector<256x128xf32>, vector<128x128xf32>, vector<256x128xf32> -> vector<256x128xf32>
    %10 = arith.truncf %9 : vector<256x128xf32> to vector<256x128xbf16>
    %cst_9 = arith.constant dense<0.000000e+00> : vector<256x128xf32>
    %11 = tpu.matmul %0, %10, %cst_9 {dimension_numbers = #tpu.dot_dimension_numbers<[1], [0], [0], [1], [0, 0, 1, 1], [], []>} : vector<256x256xbf16>, vector<256x128xbf16>, vector<256x128xf32> -> vector<256x128xf32>
    %c0_10 = arith.constant 0 : index
    %c0_11 = arith.constant 0 : index
    %12 = vector.load %arg5[%c0_10, %c0_11] : memref<1x128xf32, #tpu.memory_space<vmem>>, vector<1x128xf32>
    %13 = vector.broadcast %12 : vector<1x128xf32> to vector<256x128xf32>
    %14 = arith.addf %11, %13 : vector<256x128xf32>
    %15 = arith.negf %14 : vector<256x128xf32>
    %16 = math.exp %15 : vector<256x128xf32>
    %cst_12 = arith.constant 1.000000e+00 : f32
    %17 = vector.broadcast %cst_12 : f32 to vector<256x128xf32>
    %18 = arith.addf %17, %16 : vector<256x128xf32>
    %19 = arith.divf %17, %18 : vector<256x128xf32>
    %c0_13 = arith.constant 0 : index
    %c0_14 = arith.constant 0 : index
    %20 = vector.load %arg6[%c0_13, %c0_14] : memref<256x128xf32, #tpu.memory_space<vmem>>, vector<256x128xf32>
    tpu.vector_store %arg6[%c0_13, %c0_14], %19 {strides = array<i32>} : memref<256x128xf32, #tpu.memory_space<vmem>>, vector<256x128xf32>,
    return
  }
  func.func @transform_0(%arg0: i32) -> (i32, i32) {
    %c0_i32 = arith.constant 0 : i32
    %c0_i32_0 = arith.constant 0 : i32
    %c0_i32_1 = arith.constant 0 : i32
    return %c0_i32, %c0_i32_0 : i32, i32
  }
  func.func @transform_1(%arg0: i32) -> (i32, i32) {
    %c0_i32 = arith.constant 0 : i32
    %c0_i32_0 = arith.constant 0 : i32
    %c0_i32_1 = arith.constant 0 : i32
    return %c0_i32, %c0_i32_0 : i32, i32
  }
  func.func @transform_2(%arg0: i32) -> (i32, i32) {
    %c0_i32 = arith.constant 0 : i32
    %c0_i32_0 = arith.constant 0 : i32
    %c0_i32_1 = arith.constant 0 : i32
    return %c0_i32, %c0_i32_0 : i32, i32
  }
  func.func @transform_3(%arg0: i32) -> (i32, i32) {
    %c0_i32 = arith.constant 0 : i32
    %c0_i32_0 = arith.constant 0 : i32
    %c0_i32_1 = arith.constant 0 : i32
    return %c0_i32, %c0_i32_0 : i32, i32
  }
  func.func @transform_4(%arg0: i32) -> (i32, i32) {
    %c0_i32 = arith.constant 0 : i32
    %c0_i32_0 = arith.constant 0 : i32
    %c0_i32_1 = arith.constant 0 : i32
    return %c0_i32, %c0_i32_0 : i32, i32
  }
  func.func @transform_5(%arg0: i32) -> (i32, i32) {
    %c0_i32 = arith.constant 0 : i32
    %c0_i32_0 = arith.constant 0 : i32
    %c0_i32_1 = arith.constant 0 : i32
    return %c0_i32, %c0_i32_0 : i32, i32
  }
}

</mosaic_0001>

<llo_original>
// kernel: forward.1
$region0: #{forward.1}
  #allocation0 [shape = 'u32[]', space=smem, size = 0x4, offset = 0x4, fixed_abs, tag = 'smem constant byte address 0x4 - core index']
  #allocation1 [shape = 'u32[144,128]{1,0:T(1,128)}', space=vmem, size = 0x12000, scoped, tag = 'internal scratch']
  %s0 = inlined_call_operand.vmem [shape: bf16[256,256], index: 0, kind: input, shape index: {}]
  %s1 = inlined_call_operand.vmem [shape: bf16[256,128], index: 1, kind: input, shape index: {}]
  %s2 = inlined_call_operand.vmem [shape: f32[1,128], index: 2, kind: input, shape index: {}, may-alias: {2,4}]
  %s3 = inlined_call_operand.vmem [shape: f32[128,128], index: 3, kind: input, shape index: {}]
  %s4 = inlined_call_operand.vmem [shape: f32[1,128], index: 4, kind: input, shape index: {}, may-alias: {2,4}]
  %s5 = inlined_call_operand.vmem [shape: f32[256,128], index: 5, kind: output, shape index: {}]
  %s6 = sld [smem:[#allocation0]]
  $region30: #{forward.1} parent=0
    _
  %s8 = ssub.s32 1, %s6
  %s9 = scalar_select 0, %s8, %s6
  // Predicated region
  $region2: #{forward.1} parent=0 // pred_check
    _
  $region3: #{forward.1} parent=0 // pred_check_branch
    %11 = sbr.rel (0) target = $region5
  $region4: #{forward.1} parent=0 // pred_region
    _
  $region5: #{forward.1} parent=0 // pred_fallthru
    _
  // Predicated region
  $region6: #{forward.1} parent=0 // pred_check
    _
  $region7: #{forward.1} parent=0 // pred_check_branch
    %13 = sbr.rel (0) target = $region9
  $region8: #{forward.1} parent=0 // pred_region
    _
  $region9: #{forward.1} parent=0 // pred_fallthru
    _
  // Predicated region
  $region10: #{forward.1} parent=0 // pred_check
    _
  $region11: #{forward.1} parent=0 // pred_check_branch
    %15 = sbr.rel (0) target = $region13
  $region12: #{forward.1} parent=0 // pred_region
    _
  $region13: #{forward.1} parent=0 // pred_fallthru
    _
  // Predicated region
  $region14: #{forward.1} parent=0 // pred_check
    _
  $region15: #{forward.1} parent=0 // pred_check_branch
    %17 = sbr.rel (0) target = $region17
  $region16: #{forward.1} parent=0 // pred_region
    _
  $region17: #{forward.1} parent=0 // pred_fallthru
    _
  // Predicated region
  $region18: #{forward.1} parent=0 // pred_check
    _
  $region19: #{forward.1} parent=0 // pred_check_branch
    %19 = sbr.rel (0) target = $region21
  $region20: #{forward.1} parent=0 // pred_region
    _
  $region21: #{forward.1} parent=0 // pred_fallthru
    _
  %v21 = vld [vmem:[%s0] sm:$0xff]
  %v22 = vld [vmem:[%s0 + $0x8] sm:$0xff]
  %v23 = vld [vmem:[%s0 + $0x10] sm:$0xff]
  %v24 = vld [vmem:[%s0 + $0x18] sm:$0xff]
  %v25 = vld [vmem:[%s0 + $0x20] sm:$0xff]
  %v26 = vld [vmem:[%s0 + $0x28] sm:$0xff]
  %v27 = vld [vmem:[%s0 + $0x30] sm:$0xff]
  %v28 = vld [vmem:[%s0 + $0x38] sm:$0xff]
  %v29 = vld [vmem:[%s0 + $0x40] sm:$0xff]
  %v30 = vld [vmem:[%s0 + $0x48] sm:$0xff]
  %v31 = vld [vmem:[%s0 + $0x50] sm:$0xff]
  %v32 = vld [vmem:[%s0 + $0x58] sm:$0xff]
  %v33 = vld [vmem:[%s0 + $0x60] sm:$0xff]
  %v34 = vld [vmem:[%s0 + $0x68] sm:$0xff]
  %v35 = vld [vmem:[%s0 + $0x70] sm:$0xff]
  %v36 = vld [vmem:[%s0 + $0x78] sm:$0xff]
  %v37 = vld [vmem:[%s0 + $0x80] sm:$0xff]
  %v38 = vld [vmem:[%s0 + $0x88] sm:$0xff]
  %v39 = vld [vmem:[%s0 + $0x90] sm:$0xff]
  %v40 = vld [vmem:[%s0 + $0x98] sm:$0xff]
  %v41 = vld [vmem:[%s0 + $0xa0] sm:$0xff]
  %v42 = vld [vmem:[%s0 + $0xa8] sm:$0xff]
  %v43 = vld [vmem:[%s0 + $0xb0] sm:$0xff]
  %v44 = vld [vmem:[%s0 + $0xb8] sm:$0xff]
  %v45 = vld [vmem:[%s0 + $0xc0] sm:$0xff]
  %v46 = vld [vmem:[%s0 + $0xc8] sm:$0xff]
  %v47 = vld [vmem:[%s0 + $0xd0] sm:$0xff]
  %v48 = vld [vmem:[%s0 + $0xd8] sm:$0xff]
  %v49 = vld [vmem:[%s0 + $0xe0] sm:$0xff]
  %v50 = vld [vmem:[%s0 + $0xe8] sm:$0xff]
  %v51 = vld [vmem:[%s0 + $0xf0] sm:$0xff]
  %v52 = vld [vmem:[%s0 + $0xf8] sm:$0xff]
  %v53 = vld [vmem:[%s1] sm:$0xf]
  %v54 = vld [vmem:[%s1 + $0x4] sm:$0xf]
  %v55 = vld [vmem:[%s1 + $0x8] sm:$0xf]
  %v56 = vld [vmem:[%s1 + $0xc] sm:$0xf]
  %v57 = vld [vmem:[%s1 + $0x10] sm:$0xf]
  %v58 = vld [vmem:[%s1 + $0x14] sm:$0xf]
  %v59 = vld [vmem:[%s1 + $0x18] sm:$0xf]
  %v60 = vld [vmem:[%s1 + $0x1c] sm:$0xf]
  %v61 = vld [vmem:[%s1 + $0x20] sm:$0xf]
  %v62 = vld [vmem:[%s1 + $0x24] sm:$0xf]
  %v63 = vld [vmem:[%s1 + $0x28] sm:$0xf]
  %v64 = vld [vmem:[%s1 + $0x2c] sm:$0xf]
  %v65 = vld [vmem:[%s1 + $0x30] sm:$0xf]
  %v66 = vld [vmem:[%s1 + $0x34] sm:$0xf]
  %v67 = vld [vmem:[%s1 + $0x38] sm:$0xf]
  %v68 = vld [vmem:[%s1 + $0x3c] sm:$0xf]
  %v69 = vld [vmem:[%s1 + $0x40] sm:$0xf]
  %v70 = vld [vmem:[%s1 + $0x44] sm:$0xf]
  %v71 = vld [vmem:[%s1 + $0x48] sm:$0xf]
  %v72 = vld [vmem:[%s1 + $0x4c] sm:$0xf]
  %v73 = vld [vmem:[%s1 + $0x50] sm:$0xf]
  %v74 = vld [vmem:[%s1 + $0x54] sm:$0xf]
  %v75 = vld [vmem:[%s1 + $0x58] sm:$0xf]
  %v76 = vld [vmem:[%s1 + $0x5c] sm:$0xf]
  %v77 = vld [vmem:[%s1 + $0x60] sm:$0xf]
  %v78 = vld [vmem:[%s1 + $0x64] sm:$0xf]
  %v79 = vld [vmem:[%s1 + $0x68] sm:$0xf]
  %v80 = vld [vmem:[%s1 + $0x6c] sm:$0xf]
  %v81 = vld [vmem:[%s1 + $0x70] sm:$0xf]
  %v82 = vld [vmem:[%s1 + $0x74] sm:$0xf]
  %v83 = vld [vmem:[%s1 + $0x78] sm:$0xf]
  %v84 = vld [vmem:[%s1 + $0x7c] sm:$0xf]
  %v85 = vld [vmem:[%s2] sm:$0x1]
  %v87 = vlaneseq
  %v88 = vshrl.u32 %v87, 7
  %v89 = vsub.s32 0, %v88
  %v90 = vrot.slane %v85, %v89
  %v124 = vunpack.c.l.b16 %v21
  %v125 = vunpack.c.h.b16 %v21
  %v126 = vunpack.c.l.b16 %v22
  %v127 = vunpack.c.h.b16 %v22
  %v128 = vunpack.c.l.b16 %v23
  %v129 = vunpack.c.h.b16 %v23
  %v130 = vunpack.c.l.b16 %v24
  %v131 = vunpack.c.h.b16 %v24
  %v132 = vunpack.c.l.b16 %v25
  %v133 = vunpack.c.h.b16 %v25
  %v134 = vunpack.c.l.b16 %v26
  %v135 = vunpack.c.h.b16 %v26
  %v136 = vunpack.c.l.b16 %v27
  %v137 = vunpack.c.h.b16 %v27
  %v138 = vunpack.c.l.b16 %v28
  %v139 = vunpack.c.h.b16 %v28
  %v140 = vunpack.c.l.b16 %v29
  %v141 = vunpack.c.h.b16 %v29
  %v142 = vunpack.c.l.b16 %v30
  %v143 = vunpack.c.h.b16 %v30
  %v144 = vunpack.c.l.b16 %v31
  %v145 = vunpack.c.h.b16 %v31
  %v146 = vunpack.c.l.b16 %v32
  %v147 = vunpack.c.h.b16 %v32
  %v148 = vunpack.c.l.b16 %v33
  %v149 = vunpack.c.h.b16 %v33
  %v150 = vunpack.c.l.b16 %v34
  %v151 = vunpack.c.h.b16 %v34
  %v152 = vunpack.c.l.b16 %v35
  %v153 = vunpack.c.h.b16 %v35
  %v154 = vunpack.c.l.b16 %v36
  %v155 = vunpack.c.h.b16 %v36
  %v156 = vunpack.c.l.b16 %v37
  %v157 = vunpack.c.h.b16 %v37
  %v158 = vunpack.c.l.b16 %v38
  %v159 = vunpack.c.h.b16 %v38
  %v160 = vunpack.c.l.b16 %v39
  %v161 = vunpack.c.h.b16 %v39
  %v162 = vunpack.c.l.b16 %v40
  %v163 = vunpack.c.h.b16 %v40
  %v164 = vunpack.c.l.b16 %v41
  %v165 = vunpack.c.h.b16 %v41
  %v166 = vunpack.c.l.b16 %v42
  %v167 = vunpack.c.h.b16 %v42
  %v168 = vunpack.c.l.b16 %v43
  %v169 = vunpack.c.h.b16 %v43
  %v170 = vunpack.c.l.b16 %v44
  %v171 = vunpack.c.h.b16 %v44
  %v172 = vunpack.c.l.b16 %v45
  %v173 = vunpack.c.h.b16 %v45
  %v174 = vunpack.c.l.b16 %v46
  %v175 = vunpack.c.h.b16 %v46
  %v176 = vunpack.c.l.b16 %v47
  %v177 = vunpack.c.h.b16 %v47
  %v178 = vunpack.c.l.b16 %v48
  %v179 = vunpack.c.h.b16 %v48
  %v180 = vunpack.c.l.b16 %v49
  %v181 = vunpack.c.h.b16 %v49
  %v182 = vunpack.c.l.b16 %v50
  %v183 = vunpack.c.h.b16 %v50
  %v184 = vunpack.c.l.b16 %v51
  %v185 = vunpack.c.h.b16 %v51
  %v186 = vunpack.c.l.b16 %v52
  %v187 = vunpack.c.h.b16 %v52
  %v188 = vpack.c.b16 %v126, %v124
  %v189 = vpack.c.b16 %v127, %v125
  %v190 = vpack.c.b16 %v130, %v128
  %v191 = vpack.c.b16 %v131, %v129
  %v192 = vpack.c.b16 %v134, %v132
  %v193 = vpack.c.b16 %v135, %v133
  %v194 = vpack.c.b16 %v138, %v136
  %v195 = vpack.c.b16 %v139, %v137
  %v196 = vpack.c.b16 %v142, %v140
  %v197 = vpack.c.b16 %v143, %v141
  %v198 = vpack.c.b16 %v146, %v144
  %v199 = vpack.c.b16 %v147, %v145
  %v200 = vpack.c.b16 %v150, %v148
  %v201 = vpack.c.b16 %v151, %v149
  %v202 = vpack.c.b16 %v154, %v152
  %v203 = vpack.c.b16 %v155, %v153
  %v204 = vpack.c.b16 %v158, %v156
  %v205 = vpack.c.b16 %v159, %v157
  %v206 = vpack.c.b16 %v162, %v160
  %v207 = vpack.c.b16 %v163, %v161
  %v208 = vpack.c.b16 %v166, %v164
  %v209 = vpack.c.b16 %v167, %v165
  %v210 = vpack.c.b16 %v170, %v168
  %v211 = vpack.c.b16 %v171, %v169
  %v212 = vpack.c.b16 %v174, %v172
  %v213 = vpack.c.b16 %v175, %v173
  %v214 = vpack.c.b16 %v178, %v176
  %v215 = vpack.c.b16 %v179, %v177
  %v216 = vpack.c.b16 %v182, %v180
  %v217 = vpack.c.b16 %v183, %v181
  %v218 = vpack.c.b16 %v186, %v184
  %v219 = vpack.c.b16 %v187, %v185
  %v284 = vunpack.c.l.b16 %v53
  %v285 = vunpack.c.l.b16 %v54
  %v286 = vunpack.c.l.b16 %v55
  %v287 = vunpack.c.l.b16 %v56
  %v288 = vunpack.c.l.b16 %v57
  %v289 = vunpack.c.l.b16 %v58
  %v290 = vunpack.c.l.b16 %v59
  %v291 = vunpack.c.l.b16 %v60
  %v292 = vunpack.c.l.b16 %v61
  %v293 = vunpack.c.l.b16 %v62
  %v294 = vunpack.c.l.b16 %v63
  %v295 = vunpack.c.l.b16 %v64
  %v296 = vunpack.c.l.b16 %v65
  %v297 = vunpack.c.l.b16 %v66
  %v298 = vunpack.c.l.b16 %v67
  %v299 = vunpack.c.l.b16 %v68
  %v300 = vunpack.c.l.b16 %v69
  %v301 = vunpack.c.l.b16 %v70
  %v302 = vunpack.c.l.b16 %v71
  %v303 = vunpack.c.l.b16 %v72
  %v304 = vunpack.c.l.b16 %v73
  %v305 = vunpack.c.l.b16 %v74
  %v306 = vunpack.c.l.b16 %v75
  %v307 = vunpack.c.l.b16 %v76
  %v308 = vunpack.c.l.b16 %v77
  %v309 = vunpack.c.l.b16 %v78
  %v310 = vunpack.c.l.b16 %v79
  %v311 = vunpack.c.l.b16 %v80
  %v312 = vunpack.c.l.b16 %v81
  %v313 = vunpack.c.l.b16 %v82
  %v314 = vunpack.c.l.b16 %v83
  %v315 = vunpack.c.l.b16 %v84
  %v316 = vpack.c.b16 %v285, %v284
  %v317 = vpack.c.b16 %v287, %v286
  %v318 = vpack.c.b16 %v289, %v288
  %v319 = vpack.c.b16 %v291, %v290
  %v320 = vpack.c.b16 %v293, %v292
  %v321 = vpack.c.b16 %v295, %v294
  %v322 = vpack.c.b16 %v297, %v296
  %v323 = vpack.c.b16 %v299, %v298
  %v324 = vpack.c.b16 %v301, %v300
  %v325 = vpack.c.b16 %v303, %v302
  %v326 = vpack.c.b16 %v305, %v304
  %v327 = vpack.c.b16 %v307, %v306
  %v328 = vpack.c.b16 %v309, %v308
  %v329 = vpack.c.b16 %v311, %v310
  %v330 = vpack.c.b16 %v313, %v312
  %v331 = vpack.c.b16 %v315, %v314
  %348 = vmatprep.subr.bf16.mxu0 0
  %349 = vmatpush1.bf16.msra.mxu0 %v316
  %350 = vmatprep.subr.bf16.mxu0 0
  %351 = vmatpush1.bf16.msra.mxu0 %v317
  %352 = vmatprep.subr.bf16.mxu0 0
  %353 = vmatpush1.bf16.msra.mxu0 %v318
  %354 = vmatprep.subr.bf16.mxu0 0
  %355 = vmatpush1.bf16.msra.mxu0 %v319
  %356 = vmatprep.subr.bf16.mxu0 0
  %357 = vmatpush1.bf16.msra.mxu0 %v320
  %358 = vmatprep.subr.bf16.mxu0 0
  %359 = vmatpush1.bf16.msra.mxu0 %v321
  %360 = vmatprep.subr.bf16.mxu0 0
  %361 = vmatpush1.bf16.msra.mxu0 %v322
  %362 = vmatprep.subr.bf16.mxu0 0
  %363 = vmatpush1.bf16.msra.mxu0 %v323
  %364 = vmatprep.subr.bf16.mxu0 0
  %365 = vmatpush1.bf16.msra.mxu0 %v324
  %366 = vmatprep.subr.bf16.mxu0 0
  %367 = vmatpush1.bf16.msra.mxu0 %v325
  %368 = vmatprep.subr.bf16.mxu0 0
  %369 = vmatpush1.bf16.msra.mxu0 %v326
  %370 = vmatprep.subr.bf16.mxu0 0
  %371 = vmatpush1.bf16.msra.mxu0 %v327
  %372 = vmatprep.subr.bf16.mxu0 0
  %373 = vmatpush1.bf16.msra.mxu0 %v328
  %374 = vmatprep.subr.bf16.mxu0 0
  %375 = vmatpush1.bf16.msra.mxu0 %v329
  %376 = vmatprep.subr.bf16.mxu0 0
  %377 = vmatpush1.bf16.msra.mxu0 %v330
  %378 = vmatprep.subr.bf16.mxu0 0
  %379 = vmatpush1.bf16.msra.mxu0 %v331
  %380 = vmatprep.mubr.bf16.mxu0 %v189
  %381 = vmatmul.mubr.bf16.gmra.mrb[0].mxu0 %v188
  %v382 = vpop.f32.mrb[0].mxu0
  %v383 = vadd.f32 %v90, %v382
  %v384 = vpop.f32.mrb[0].mxu0
  %v385 = vpop.f32.mrb[0].mxu0
  %v386 = vadd.f32 %v90, %v385
  %v387 = vpop.f32.mrb[0].mxu0
  %388 = vmatprep.mubr.bf16.mxu0 %v191
  %389 = vmatmul.mubr.bf16.gmra.mrb[0].mxu0 %v190
  %v390 = vpop.f32.mrb[0].mxu0
  %v391 = vadd.f32 %v90, %v390
  %v392 = vpop.f32.mrb[0].mxu0
  %v393 = vpop.f32.mrb[0].mxu0
  %v394 = vadd.f32 %v90, %v393
  %v395 = vpop.f32.mrb[0].mxu0
  %396 = vmatprep.mubr.bf16.mxu0 %v193
  %397 = vmatmul.mubr.bf16.gmra.mrb[0].mxu0 %v192
  %v398 = vpop.f32.mrb[0].mxu0
  %v399 = vadd.f32 %v90, %v398
  %v400 = vpop.f32.mrb[0].mxu0
  %v401 = vpop.f32.mrb[0].mxu0
  %v402 = vadd.f32 %v90, %v401
  %v403 = vpop.f32.mrb[0].mxu0
  %404 = vmatprep.mubr.bf16.mxu0 %v195
  %405 = vmatmul.mubr.bf16.gmra.mrb[0].mxu0 %v194
  %v406 = vpop.f32.mrb[0].mxu0
  %v407 = vadd.f32 %v90, %v406
  %v408 = vpop.f32.mrb[0].mxu0
  %v409 = vpop.f32.mrb[0].mxu0
  %v410 = vadd.f32 %v90, %v409
  %v411 = vpop.f32.mrb[0].mxu0
  %412 = vmatprep.mubr.bf16.mxu0 %v197
  %413 = vmatmul.mubr.bf16.gmra.mrb[0].mxu0 %v196
  %v414 = vpop.f32.mrb[0].mxu0
  %v415 = vadd.f32 %v90, %v414
  %v416 = vpop.f32.mrb[0].mxu0
  %v417 = vpop.f32.mrb[0].mxu0
  %v418 = vadd.f32 %v90, %v417
  %v419 = vpop.f32.mrb[0].mxu0
  %420 = vmatprep.mubr.bf16.mxu0 %v199
  %421 = vmatmul.mubr.bf16.gmra.mrb[0].mxu0 %v198
  %v422 = vpop.f32.mrb[0].mxu0
  %v423 = vadd.f32 %v90, %v422
  %v424 = vpop.f32.mrb[0].mxu0
  %v425 = vpop.f32.mrb[0].mxu0
  %v426 = vadd.f32 %v90, %v425
  %v427 = vpop.f32.mrb[0].mxu0
  %428 = vmatprep.mubr.bf16.mxu0 %v201
  %429 = vmatmul.mubr.bf16.gmra.mrb[0].mxu0 %v200
  %v430 = vpop.f32.mrb[0].mxu0
  %v431 = vadd.f32 %v90, %v430
  %v432 = vpop.f32.mrb[0].mxu0
  %v433 = vpop.f32.mrb[0].mxu0
  %v434 = vadd.f32 %v90, %v433
  %v435 = vpop.f32.mrb[0].mxu0
  %436 = vmatprep.mubr.bf16.mxu0 %v203
  %437 = vmatmul.mubr.bf16.gmra.mrb[0].mxu0 %v202
  %v438 = vpop.f32.mrb[0].mxu0
  %v439 = vadd.f32 %v90, %v438
  %v440 = vpop.f32.mrb[0].mxu0
  %v441 = vpop.f32.mrb[0].mxu0
  %v442 = vadd.f32 %v90, %v441
  %v443 = vpop.f32.mrb[0].mxu0
  %444 = vmatprep.mubr.bf16.mxu0 %v205
  %445 = vmatmul.mubr.bf16.gmra.mrb[0].mxu0 %v204
  %v446 = vpop.f32.mrb[0].mxu0
  %v447 = vadd.f32 %v90, %v446
  %v448 = vpop.f32.mrb[0].mxu0
  %v449 = vpop.f32.mrb[0].mxu0
  %v450 = vadd.f32 %v90, %v449
  %v451 = vpop.f32.mrb[0].mxu0
  %452 = vmatprep.mubr.bf16.mxu0 %v207
  %453 = vmatmul.mubr.bf16.gmra.mrb[0].mxu0 %v206
  %v454 = vpop.f32.mrb[0].mxu0
  %v455 = vadd.f32 %v90, %v454
  %v456 = vpop.f32.mrb[0].mxu0
  %v457 = vpop.f32.mrb[0].mxu0
  %v458 = vadd.f32 %v90, %v457
  %v459 = vpop.f32.mrb[0].mxu0
  %460 = vmatprep.mubr.bf16.mxu0 %v209
  %461 = vmatmul.mubr.bf16.gmra.mrb[0].mxu0 %v208
  %v462 = vpop.f32.mrb[0].mxu0
  %v463 = vadd.f32 %v90, %v462
  %v464 = vpop.f32.mrb[0].mxu0
  %v465 = vpop.f32.mrb[0].mxu0
  %v466 = vadd.f32 %v90, %v465
  %v467 = vpop.f32.mrb[0].mxu0
  %468 = vmatprep.mubr.bf16.mxu0 %v211
  %469 = vmatmul.mubr.bf16.gmra.mrb[0].mxu0 %v210
  %v470 = vpop.f32.mrb[0].mxu0
  %v471 = vadd.f32 %v90, %v470
  %v472 = vpop.f32.mrb[0].mxu0
  %v473 = vpop.f32.mrb[0].mxu0
  %v474 = vadd.f32 %v90, %v473
  %v475 = vpop.f32.mrb[0].mxu0
  %476 = vmatprep.mubr.bf16.mxu0 %v213
  %477 = vmatmul.mubr.bf16.gmra.mrb[0].mxu0 %v212
  %v478 = vpop.f32.mrb[0].mxu0
  %v479 = vadd.f32 %v90, %v478
  %v480 = vpop.f32.mrb[0].mxu0
  %v481 = vpop.f32.mrb[0].mxu0
  %v482 = vadd.f32 %v90, %v481
  %v483 = vpop.f32.mrb[0].mxu0
  %484 = vmatprep.mubr.bf16.mxu0 %v215
  %485 = vmatmul.mubr.bf16.gmra.mrb[0].mxu0 %v214
  %v486 = vpop.f32.mrb[0].mxu0
  %v487 = vadd.f32 %v90, %v486
  %v488 = vpop.f32.mrb[0].mxu0
  %v489 = vpop.f32.mrb[0].mxu0
  %v490 = vadd.f32 %v90, %v489
  %v491 = vpop.f32.mrb[0].mxu0
  %492 = vmatprep.mubr.bf16.mxu0 %v217
  %493 = vmatmul.mubr.bf16.gmra.mrb[0].mxu0 %v216
  %v494 = vpop.f32.mrb[0].mxu0
  %v495 = vadd.f32 %v90, %v494
  %v496 = vpop.f32.mrb[0].mxu0
  %v497 = vpop.f32.mrb[0].mxu0
  %v498 = vadd.f32 %v90, %v497
  %v499 = vpop.f32.mrb[0].mxu0
  %500 = vmatprep.mubr.bf16.mxu0 %v219
  %501 = vmatmul.mubr.bf16.gmra.mrb[0].mxu0 %v218
  %v502 = vpop.f32.mrb[0].mxu0
  %v503 = vadd.f32 %v90, %v502
  %v504 = vpop.f32.mrb[0].mxu0
  %v505 = vpop.f32.mrb[0].mxu0
  %v506 = vadd.f32 %v90, %v505
  %v507 = vpop.f32.mrb[0].mxu0
  %508 = vdwg.mxu0
  %v509 = vmax.f32 %v383, 0.0
  %v510 = vmax.f32 %v386, 0.0
  %v511 = vmax.f32 %v391, 0.0
  %v512 = vmax.f32 %v394, 0.0
  %v513 = vmax.f32 %v399, 0.0
  %v514 = vmax.f32 %v402, 0.0
  %v515 = vmax.f32 %v407, 0.0
  %v516 = vmax.f32 %v410, 0.0
  %v517 = vmax.f32 %v415, 0.0
  %v518 = vmax.f32 %v418, 0.0
  %v519 = vmax.f32 %v423, 0.0
  %v520 = vmax.f32 %v426, 0.0
  %v521 = vmax.f32 %v431, 0.0
  %v522 = vmax.f32 %v434, 0.0
  %v523 = vmax.f32 %v439, 0.0
  %v524 = vmax.f32 %v442, 0.0
  %v525 = vmax.f32 %v447, 0.0
  %v526 = vmax.f32 %v450, 0.0
  %v527 = vmax.f32 %v455, 0.0
  %v528 = vmax.f32 %v458, 0.0
  %v529 = vmax.f32 %v463, 0.0
  %v530 = vmax.f32 %v466, 0.0
  %v531 = vmax.f32 %v471, 0.0
  %v532 = vmax.f32 %v474, 0.0
  %v533 = vmax.f32 %v479, 0.0
  %v534 = vmax.f32 %v482, 0.0
  %v535 = vmax.f32 %v487, 0.0
  %v536 = vmax.f32 %v490, 0.0
  %v537 = vmax.f32 %v495, 0.0
  %v538 = vmax.f32 %v498, 0.0
  %v539 = vmax.f32 %v503, 0.0
  %v540 = vmax.f32 %v506, 0.0
  %v541 = vld [vmem:[%s3] sm:$0xff]
  %v542 = vld [vmem:[%s3 + $0x8] sm:$0xff]
  %v543 = vld [vmem:[%s3 + $0x10] sm:$0xff]
  %v544 = vld [vmem:[%s3 + $0x18] sm:$0xff]
  %v545 = vld [vmem:[%s3 + $0x20] sm:$0xff]
  %v546 = vld [vmem:[%s3 + $0x28] sm:$0xff]
  %v547 = vld [vmem:[%s3 + $0x30] sm:$0xff]
  %v548 = vld [vmem:[%s3 + $0x38] sm:$0xff]
  %v549 = vld [vmem:[%s3 + $0x40] sm:$0xff]
  %v550 = vld [vmem:[%s3 + $0x48] sm:$0xff]
  %v551 = vld [vmem:[%s3 + $0x50] sm:$0xff]
  %v552 = vld [vmem:[%s3 + $0x58] sm:$0xff]
  %v553 = vld [vmem:[%s3 + $0x60] sm:$0xff]
  %v554 = vld [vmem:[%s3 + $0x68] sm:$0xff]
  %v555 = vld [vmem:[%s3 + $0x70] sm:$0xff]
  %v556 = vld [vmem:[%s3 + $0x78] sm:$0xff]
  %557 = vmatprep.subr.mxu0 0.0
  %558 = vmatpush1.msra.mxu0 %v541
  %559 = vmatprep.subr.mxu0 0.0
  %560 = vmatpush1.msra.mxu0 %v542
  %561 = vmatprep.subr.mxu0 0.0
  %562 = vmatpush1.msra.mxu0 %v543
  %563 = vmatprep.subr.mxu0 0.0
  %564 = vmatpush1.msra.mxu0 %v544
  %565 = vmatprep.subr.mxu0 0.0
  %566 = vmatpush1.msra.mxu0 %v545
  %567 = vmatprep.subr.mxu0 0.0
  %568 = vmatpush1.msra.mxu0 %v546
  %569 = vmatprep.subr.mxu0 0.0
  %570 = vmatpush1.msra.mxu0 %v547
  %571 = vmatprep.subr.mxu0 0.0
  %572 = vmatpush1.msra.mxu0 %v548
  %573 = vmatprep.subr.mxu0 0.0
  %574 = vmatpush1.msra.mxu0 %v549
  %575 = vmatprep.subr.mxu0 0.0
  %576 = vmatpush1.msra.mxu0 %v550
  %577 = vmatprep.subr.mxu0 0.0
  %578 = vmatpush1.msra.mxu0 %v551
  %579 = vmatprep.subr.mxu0 0.0
  %580 = vmatpush1.msra.mxu0 %v552
  %581 = vmatprep.subr.mxu0 0.0
  %582 = vmatpush1.msra.mxu0 %v553
  %583 = vmatprep.subr.mxu0 0.0
  %584 = vmatpush1.msra.mxu0 %v554
  %585 = vmatprep.subr.mxu0 0.0
  %586 = vmatpush1.msra.mxu0 %v555
  %587 = vmatprep.subr.mxu0 0.0
  %588 = vmatpush1.msra.mxu0 %v556
  %589 = vmatprep.subr.mxu0 0.0
  %590 = vmatpush1.msra.mxu0 0.0
  %591 = vmatprep.subr.mxu0 0.0
  %592 = vmatpush1.msra.mxu0 0.0
  %593 = vmatprep.subr.mxu0 0.0
  %594 = vmatpush1.msra.mxu0 0.0
  %595 = vmatprep.subr.mxu0 0.0
  %596 = vmatpush1.msra.mxu0 0.0
  %597 = vmatprep.subr.mxu0 0.0
  %598 = vmatpush1.msra.mxu0 0.0
  %599 = vmatprep.subr.mxu0 0.0
  %600 = vmatpush1.msra.mxu0 0.0
  %601 = vmatprep.subr.mxu0 0.0
  %602 = vmatpush1.msra.mxu0 0.0
  %603 = vmatprep.subr.mxu0 0.0
  %604 = vmatpush1.msra.mxu0 0.0
  %605 = vmatprep.subr.mxu0 0.0
  %606 = vmatpush1.msra.mxu0 0.0
  %607 = vmatprep.subr.mxu0 0.0
  %608 = vmatpush1.msra.mxu0 0.0
  %609 = vmatprep.subr.mxu0 0.0
  %610 = vmatpush1.msra.mxu0 0.0
  %611 = vmatprep.subr.mxu0 0.0
  %612 = vmatpush1.msra.mxu0 0.0
  %613 = vmatprep.subr.mxu0 0.0
  %614 = vmatpush1.msra.mxu0 0.0
  %615 = vmatprep.subr.mxu0 0.0
  %616 = vmatpush1.msra.mxu0 0.0
  %617 = vmatprep.subr.mxu0 0.0
  %618 = vmatpush1.msra.mxu0 0.0
  %619 = vmatprep.subr.mxu0 0.0
  %620 = vmatpush1.msra.mxu0 0.0
  %621 = vmatprep.mubr.f32.mxu0 0.0
  %622 = vmatmul.mubr.f32.gmra.mrb[0].mxu0 %v509
  %v623 = vpop.f32.mrb[0].mxu0
  %v624 = vadd.f32 0.0, %v623
  %v625 = vpop.f32.mrb[0].mxu0
  %626 = vmatprep.mubr.f32.mxu0 0.0
  %627 = vmatmul.mubr.f32.gmra.mrb[0].mxu0 %v510
  %v628 = vpop.f32.mrb[0].mxu0
  %v629 = vadd.f32 0.0, %v628
  %v630 = vpop.f32.mrb[0].mxu0
  %631 = vmatprep.mubr.f32.mxu0 0.0
  %632 = vmatmul.mubr.f32.gmra.mrb[0].mxu0 %v511
  %v633 = vpop.f32.mrb[0].mxu0
  %v634 = vadd.f32 0.0, %v633
  %v635 = vpop.f32.mrb[0].mxu0
  %636 = vmatprep.mubr.f32.mxu0 0.0
  %637 = vmatmul.mubr.f32.gmra.mrb[0].mxu0 %v512
  %v638 = vpop.f32.mrb[0].mxu0
  %v639 = vadd.f32 0.0, %v638
  %v640 = vpop.f32.mrb[0].mxu0
  %641 = vmatprep.mubr.f32.mxu0 0.0
  %642 = vmatmul.mubr.f32.gmra.mrb[0].mxu0 %v513
  %v643 = vpop.f32.mrb[0].mxu0
  %v644 = vadd.f32 0.0, %v643
  %v645 = vpop.f32.mrb[0].mxu0
  %646 = vmatprep.mubr.f32.mxu0 0.0
  %647 = vmatmul.mubr.f32.gmra.mrb[0].mxu0 %v514
  %v648 = vpop.f32.mrb[0].mxu0
  %v649 = vadd.f32 0.0, %v648
  %v650 = vpop.f32.mrb[0].mxu0
  %651 = vmatprep.mubr.f32.mxu0 0.0
  %652 = vmatmul.mubr.f32.gmra.mrb[0].mxu0 %v515
  %v653 = vpop.f32.mrb[0].mxu0
  %v654 = vadd.f32 0.0, %v653
  %v655 = vpop.f32.mrb[0].mxu0
  %656 = vmatprep.mubr.f32.mxu0 0.0
  %657 = vmatmul.mubr.f32.gmra.mrb[0].mxu0 %v516
  %v658 = vpop.f32.mrb[0].mxu0
  %v659 = vadd.f32 0.0, %v658
  %v660 = vpop.f32.mrb[0].mxu0
  %661 = vmatprep.mubr.f32.mxu0 0.0
  %662 = vmatmul.mubr.f32.gmra.mrb[0].mxu0 %v517
  %v663 = vpop.f32.mrb[0].mxu0
  %v664 = vadd.f32 0.0, %v663
  %v665 = vpop.f32.mrb[0].mxu0
  %666 = vmatprep.mubr.f32.mxu0 0.0
  %667 = vmatmul.mubr.f32.gmra.mrb[0].mxu0 %v518
  %v668 = vpop.f32.mrb[0].mxu0
  %v669 = vadd.f32 0.0, %v668
  %v670 = vpop.f32.mrb[0].mxu0
  %671 = vmatprep.mubr.f32.mxu0 0.0
  %672 = vmatmul.mubr.f32.gmra.mrb[0].mxu0 %v519
  %v673 = vpop.f32.mrb[0].mxu0
  %v674 = vadd.f32 0.0, %v673
  %v675 = vpop.f32.mrb[0].mxu0
  %676 = vmatprep.mubr.f32.mxu0 0.0
  %677 = vmatmul.mubr.f32.gmra.mrb[0].mxu0 %v520
  %v678 = vpop.f32.mrb[0].mxu0
  %v679 = vadd.f32 0.0, %v678
  %v680 = vpop.f32.mrb[0].mxu0
  %681 = vmatprep.mubr.f32.mxu0 0.0
  %682 = vmatmul.mubr.f32.gmra.mrb[0].mxu0 %v521
  %v683 = vpop.f32.mrb[0].mxu0
  %v684 = vadd.f32 0.0, %v683
  %v685 = vpop.f32.mrb[0].mxu0
  %686 = vmatprep.mubr.f32.mxu0 0.0
  %687 = vmatmul.mubr.f32.gmra.mrb[0].mxu0 %v522
  %v688 = vpop.f32.mrb[0].mxu0
  %v689 = vadd.f32 0.0, %v688
  %v690 = vpop.f32.mrb[0].mxu0
  %691 = vmatprep.mubr.f32.mxu0 0.0
  %692 = vmatmul.mubr.f32.gmra.mrb[0].mxu0 %v523
  %v693 = vpop.f32.mrb[0].mxu0
  %v694 = vadd.f32 0.0, %v693
  %v695 = vpop.f32.mrb[0].mxu0
  %696 = vmatprep.mubr.f32.mxu0 0.0
  %697 = vmatmul.mubr.f32.gmra.mrb[0].mxu0 %v524
  %v698 = vpop.f32.mrb[0].mxu0
  %v699 = vadd.f32 0.0, %v698
  %v700 = vpop.f32.mrb[0].mxu0
  %701 = vmatprep.mubr.f32.mxu0 0.0
  %702 = vmatmul.mubr.f32.gmra.mrb[0].mxu0 %v525
  %v703 = vpop.f32.mrb[0].mxu0
  %v704 = vadd.f32 0.0, %v703
  %v705 = vpop.f32.mrb[0].mxu0
  %706 = vmatprep.mubr.f32.mxu0 0.0
  %707 = vmatmul.mubr.f32.gmra.mrb[0].mxu0 %v526
  %v708 = vpop.f32.mrb[0].mxu0
  %v709 = vadd.f32 0.0, %v708
  %v710 = vpop.f32.mrb[0].mxu0
  %711 = vmatprep.mubr.f32.mxu0 0.0
  %712 = vmatmul.mubr.f32.gmra.mrb[0].mxu0 %v527
  %v713 = vpop.f32.mrb[0].mxu0
  %v714 = vadd.f32 0.0, %v713
  %v715 = vpop.f32.mrb[0].mxu0
  %716 = vmatprep.mubr.f32.mxu0 0.0
  %717 = vmatmul.mubr.f32.gmra.mrb[0].mxu0 %v528
  %v718 = vpop.f32.mrb[0].mxu0
  %v719 = vadd.f32 0.0, %v718
  %v720 = vpop.f32.mrb[0].mxu0
  %721 = vmatprep.mubr.f32.mxu0 0.0
  %722 = vmatmul.mubr.f32.gmra.mrb[0].mxu0 %v529
  %v723 = vpop.f32.mrb[0].mxu0
  %v724 = vadd.f32 0.0, %v723
  %v725 = vpop.f32.mrb[0].mxu0
  %726 = vmatprep.mubr.f32.mxu0 0.0
  %727 = vmatmul.mubr.f32.gmra.mrb[0].mxu0 %v530
  %v728 = vpop.f32.mrb[0].mxu0
  %v729 = vadd.f32 0.0, %v728
  %v730 = vpop.f32.mrb[0].mxu0
  %731 = vmatprep.mubr.f32.mxu0 0.0
  %732 = vmatmul.mubr.f32.gmra.mrb[0].mxu0 %v531
  %v733 = vpop.f32.mrb[0].mxu0
  %v734 = vadd.f32 0.0, %v733
  %v735 = vpop.f32.mrb[0].mxu0
  %736 = vmatprep.mubr.f32.mxu0 0.0
  %737 = vmatmul.mubr.f32.gmra.mrb[0].mxu0 %v532
  %v738 = vpop.f32.mrb[0].mxu0
  %v739 = vadd.f32 0.0, %v738
  %v740 = vpop.f32.mrb[0].mxu0
  %741 = vmatprep.mubr.f32.mxu0 0.0
  %742 = vmatmul.mubr.f32.gmra.mrb[0].mxu0 %v533
  %v743 = vpop.f32.mrb[0].mxu0
  %v744 = vadd.f32 0.0, %v743
  %v745 = vpop.f32.mrb[0].mxu0
  %746 = vmatprep.mubr.f32.mxu0 0.0
  %747 = vmatmul.mubr.f32.gmra.mrb[0].mxu0 %v534
  %v748 = vpop.f32.mrb[0].mxu0
  %v749 = vadd.f32 0.0, %v748
  %v750 = vpop.f32.mrb[0].mxu0
  %751 = vmatprep.mubr.f32.mxu0 0.0
  %752 = vmatmul.mubr.f32.gmra.mrb[0].mxu0 %v535
  %v753 = vpop.f32.mrb[0].mxu0
  %v754 = vadd.f32 0.0, %v753
  %v755 = vpop.f32.mrb[0].mxu0
  %756 = vmatprep.mubr.f32.mxu0 0.0
  %757 = vmatmul.mubr.f32.gmra.mrb[0].mxu0 %v536
  %v758 = vpop.f32.mrb[0].mxu0
  %v759 = vadd.f32 0.0, %v758
  %v760 = vpop.f32.mrb[0].mxu0
  %761 = vmatprep.mubr.f32.mxu0 0.0
  %762 = vmatmul.mubr.f32.gmra.mrb[0].mxu0 %v537
  %v763 = vpop.f32.mrb[0].mxu0
  %v764 = vadd.f32 0.0, %v763
  %v765 = vpop.f32.mrb[0].mxu0
  %766 = vmatprep.mubr.f32.mxu0 0.0
  %767 = vmatmul.mubr.f32.gmra.mrb[0].mxu0 %v538
  %v768 = vpop.f32.mrb[0].mxu0
  %v769 = vadd.f32 0.0, %v768
  %v770 = vpop.f32.mrb[0].mxu0
  %771 = vmatprep.mubr.f32.mxu0 0.0
  %772 = vmatmul.mubr.f32.gmra.mrb[0].mxu0 %v539
  %v773 = vpop.f32.mrb[0].mxu0
  %v774 = vadd.f32 0.0, %v773
  %v775 = vpop.f32.mrb[0].mxu0
  %776 = vmatprep.mubr.f32.mxu0 0.0
  %777 = vmatmul.mubr.f32.gmra.mrb[0].mxu0 %v540
  %v778 = vpop.f32.mrb[0].mxu0
  %v779 = vadd.f32 0.0, %v778
  %v780 = vpop.f32.mrb[0].mxu0
  %781 = vdwg.mxu0
  %v782 = vpack.c.bf16 %v629, %v624
  %v783 = vpack.c.bf16 %v639, %v634
  %v784 = vpack.c.bf16 %v649, %v644
  %v785 = vpack.c.bf16 %v659, %v654
  %v786 = vpack.c.bf16 %v669, %v664
  %v787 = vpack.c.bf16 %v679, %v674
  %v788 = vpack.c.bf16 %v689, %v684
  %v789 = vpack.c.bf16 %v699, %v694
  %v790 = vpack.c.bf16 %v709, %v704
  %v791 = vpack.c.bf16 %v719, %v714
  %v792 = vpack.c.bf16 %v729, %v724
  %v793 = vpack.c.bf16 %v739, %v734
  %v794 = vpack.c.bf16 %v749, %v744
  %v795 = vpack.c.bf16 %v759, %v754
  %v796 = vpack.c.bf16 %v769, %v764
  %v797 = vpack.c.bf16 %v779, %v774
  %v798 = vld [vmem:[%s4] sm:$0x1]
  %v800 = vlaneseq
  %v801 = vshrl.u32 %v800, 7
  %v802 = vsub.s32 0, %v801
  %v803 = vrot.slane %v798, %v802
  %805 = vmatprep.subr.bf16.mxu0 0
  %806 = vmatpush1.bf16.msra.mxu0 %v782
  %807 = vmatprep.subr.bf16.mxu0 0
  %808 = vmatpush1.bf16.msra.mxu0 %v783
  %809 = vmatprep.subr.bf16.mxu0 0
  %810 = vmatpush1.bf16.msra.mxu0 %v784
  %811 = vmatprep.subr.bf16.mxu0 0
  %812 = vmatpush1.bf16.msra.mxu0 %v785
  %813 = vmatprep.subr.bf16.mxu0 0
  %814 = vmatpush1.bf16.msra.mxu0 %v786
  %815 = vmatprep.subr.bf16.mxu0 0
  %816 = vmatpush1.bf16.msra.mxu0 %v787
  %817 = vmatprep.subr.bf16.mxu0 0
  %818 = vmatpush1.bf16.msra.mxu0 %v788
  %819 = vmatprep.subr.bf16.mxu0 0
  %820 = vmatpush1.bf16.msra.mxu0 %v789
  %821 = vmatprep.subr.bf16.mxu0 0
  %822 = vmatpush1.bf16.msra.mxu0 %v790
  %823 = vmatprep.subr.bf16.mxu0 0
  %824 = vmatpush1.bf16.msra.mxu0 %v791
  %825 = vmatprep.subr.bf16.mxu0 0
  %826 = vmatpush1.bf16.msra.mxu0 %v792
  %827 = vmatprep.subr.bf16.mxu0 0
  %828 = vmatpush1.bf16.msra.mxu0 %v793
  %829 = vmatprep.subr.bf16.mxu0 0
  %830 = vmatpush1.bf16.msra.mxu0 %v794
  %831 = vmatprep.subr.bf16.mxu0 0
  %832 = vmatpush1.bf16.msra.mxu0 %v795
  %833 = vmatprep.subr.bf16.mxu0 0
  %834 = vmatpush1.bf16.msra.mxu0 %v796
  %835 = vmatprep.subr.bf16.mxu0 0
  %836 = vmatpush1.bf16.msra.mxu0 %v797
  %837 = vmatprep.mubr.bf16.mxu0 %v189
  %838 = vmatmul.mubr.bf16.gmra.mrb[0].mxu0 %v188
  %v839 = vpop.f32.mrb[0].mxu0
  %v840 = vadd.f32 %v803, %v839
  %v841 = vpop.f32.mrb[0].mxu0
  %v842 = vpop.f32.mrb[0].mxu0
  %v843 = vadd.f32 %v803, %v842
  %v844 = vpop.f32.mrb[0].mxu0
  %845 = vmatprep.mubr.bf16.mxu0 %v191
  %846 = vmatmul.mubr.bf16.gmra.mrb[0].mxu0 %v190
  %v847 = vpop.f32.mrb[0].mxu0
  %v848 = vadd.f32 %v803, %v847
  %v849 = vpop.f32.mrb[0].mxu0
  %v850 = vpop.f32.mrb[0].mxu0
  %v851 = vadd.f32 %v803, %v850
  %v852 = vpop.f32.mrb[0].mxu0
  %853 = vmatprep.mubr.bf16.mxu0 %v193
  %854 = vmatmul.mubr.bf16.gmra.mrb[0].mxu0 %v192
  %v855 = vpop.f32.mrb[0].mxu0
  %v856 = vadd.f32 %v803, %v855
  %v857 = vpop.f32.mrb[0].mxu0
  %v858 = vpop.f32.mrb[0].mxu0
  %v859 = vadd.f32 %v803, %v858
  %v860 = vpop.f32.mrb[0].mxu0
  %861 = vmatprep.mubr.bf16.mxu0 %v195
  %862 = vmatmul.mubr.bf16.gmra.mrb[0].mxu0 %v194
  %v863 = vpop.f32.mrb[0].mxu0
  %v864 = vadd.f32 %v803, %v863
  %v865 = vpop.f32.mrb[0].mxu0
  %v866 = vpop.f32.mrb[0].mxu0
  %v867 = vadd.f32 %v803, %v866
  %v868 = vpop.f32.mrb[0].mxu0
  %869 = vmatprep.mubr.bf16.mxu0 %v197
  %870 = vmatmul.mubr.bf16.gmra.mrb[0].mxu0 %v196
  %v871 = vpop.f32.mrb[0].mxu0
  %v872 = vadd.f32 %v803, %v871
  %v873 = vpop.f32.mrb[0].mxu0
  %v874 = vpop.f32.mrb[0].mxu0
  %v875 = vadd.f32 %v803, %v874
  %v876 = vpop.f32.mrb[0].mxu0
  %877 = vmatprep.mubr.bf16.mxu0 %v199
  %878 = vmatmul.mubr.bf16.gmra.mrb[0].mxu0 %v198
  %v879 = vpop.f32.mrb[0].mxu0
  %v880 = vadd.f32 %v803, %v879
  %v881 = vpop.f32.mrb[0].mxu0
  %v882 = vpop.f32.mrb[0].mxu0
  %v883 = vadd.f32 %v803, %v882
  %v884 = vpop.f32.mrb[0].mxu0
  %885 = vmatprep.mubr.bf16.mxu0 %v201
  %886 = vmatmul.mubr.bf16.gmra.mrb[0].mxu0 %v200
  %v887 = vpop.f32.mrb[0].mxu0
  %v888 = vadd.f32 %v803, %v887
  %v889 = vpop.f32.mrb[0].mxu0
  %v890 = vpop.f32.mrb[0].mxu0
  %v891 = vadd.f32 %v803, %v890
  %v892 = vpop.f32.mrb[0].mxu0
  %893 = vmatprep.mubr.bf16.mxu0 %v203
  %894 = vmatmul.mubr.bf16.gmra.mrb[0].mxu0 %v202
  %v895 = vpop.f32.mrb[0].mxu0
  %v896 = vadd.f32 %v803, %v895
  %v897 = vpop.f32.mrb[0].mxu0
  %v898 = vpop.f32.mrb[0].mxu0
  %v899 = vadd.f32 %v803, %v898
  %v900 = vpop.f32.mrb[0].mxu0
  %901 = vmatprep.mubr.bf16.mxu0 %v205
  %902 = vmatmul.mubr.bf16.gmra.mrb[0].mxu0 %v204
  %v903 = vpop.f32.mrb[0].mxu0
  %v904 = vadd.f32 %v803, %v903
  %v905 = vpop.f32.mrb[0].mxu0
  %v906 = vpop.f32.mrb[0].mxu0
  %v907 = vadd.f32 %v803, %v906
  %v908 = vpop.f32.mrb[0].mxu0
  %909 = vmatprep.mubr.bf16.mxu0 %v207
  %910 = vmatmul.mubr.bf16.gmra.mrb[0].mxu0 %v206
  %v911 = vpop.f32.mrb[0].mxu0
  %v912 = vadd.f32 %v803, %v911
  %v913 = vpop.f32.mrb[0].mxu0
  %v914 = vpop.f32.mrb[0].mxu0
  %v915 = vadd.f32 %v803, %v914
  %v916 = vpop.f32.mrb[0].mxu0
  %917 = vmatprep.mubr.bf16.mxu0 %v209
  %918 = vmatmul.mubr.bf16.gmra.mrb[0].mxu0 %v208
  %v919 = vpop.f32.mrb[0].mxu0
  %v920 = vadd.f32 %v803, %v919
  %v921 = vpop.f32.mrb[0].mxu0
  %v922 = vpop.f32.mrb[0].mxu0
  %v923 = vadd.f32 %v803, %v922
  %v924 = vpop.f32.mrb[0].mxu0
  %925 = vmatprep.mubr.bf16.mxu0 %v211
  %926 = vmatmul.mubr.bf16.gmra.mrb[0].mxu0 %v210
  %v927 = vpop.f32.mrb[0].mxu0
  %v928 = vadd.f32 %v803, %v927
  %v929 = vpop.f32.mrb[0].mxu0
  %v930 = vpop.f32.mrb[0].mxu0
  %v931 = vadd.f32 %v803, %v930
  %v932 = vpop.f32.mrb[0].mxu0
  %933 = vmatprep.mubr.bf16.mxu0 %v213
  %934 = vmatmul.mubr.bf16.gmra.mrb[0].mxu0 %v212
  %v935 = vpop.f32.mrb[0].mxu0
  %v936 = vadd.f32 %v803, %v935
  %v937 = vpop.f32.mrb[0].mxu0
  %v938 = vpop.f32.mrb[0].mxu0
  %v939 = vadd.f32 %v803, %v938
  %v940 = vpop.f32.mrb[0].mxu0
  %941 = vmatprep.mubr.bf16.mxu0 %v215
  %942 = vmatmul.mubr.bf16.gmra.mrb[0].mxu0 %v214
  %v943 = vpop.f32.mrb[0].mxu0
  %v944 = vadd.f32 %v803, %v943
  %v945 = vpop.f32.mrb[0].mxu0
  %v946 = vpop.f32.mrb[0].mxu0
  %v947 = vadd.f32 %v803, %v946
  %v948 = vpop.f32.mrb[0].mxu0
  %949 = vmatprep.mubr.bf16.mxu0 %v217
  %950 = vmatmul.mubr.bf16.gmra.mrb[0].mxu0 %v216
  %v951 = vpop.f32.mrb[0].mxu0
  %v952 = vadd.f32 %v803, %v951
  %v953 = vpop.f32.mrb[0].mxu0
  %v954 = vpop.f32.mrb[0].mxu0
  %v955 = vadd.f32 %v803, %v954
  %v956 = vpop.f32.mrb[0].mxu0
  %957 = vmatprep.mubr.bf16.mxu0 %v219
  %958 = vmatmul.mubr.bf16.gmra.mrb[0].mxu0 %v218
  %v959 = vpop.f32.mrb[0].mxu0
  %v960 = vadd.f32 %v803, %v959
  %v961 = vpop.f32.mrb[0].mxu0
  %v962 = vpop.f32.mrb[0].mxu0
  %v963 = vadd.f32 %v803, %v962
  %v964 = vpop.f32.mrb[0].mxu0
  %965 = vdwg.mxu0
  %v966 = vxor.u32 %v840, 2147483648
  %v967 = vxor.u32 %v843, 2147483648
  %v968 = vxor.u32 %v848, 2147483648
  %v969 = vxor.u32 %v851, 2147483648
  %v970 = vxor.u32 %v856, 2147483648
  %v971 = vxor.u32 %v859, 2147483648
  %v972 = vxor.u32 %v864, 2147483648
  %v973 = vxor.u32 %v867, 2147483648
  %v974 = vxor.u32 %v872, 2147483648
  %v975 = vxor.u32 %v875, 2147483648
  %v976 = vxor.u32 %v880, 2147483648
  %v977 = vxor.u32 %v883, 2147483648
  %v978 = vxor.u32 %v888, 2147483648
  %v979 = vxor.u32 %v891, 2147483648
  %v980 = vxor.u32 %v896, 2147483648
  %v981 = vxor.u32 %v899, 2147483648
  %v982 = vxor.u32 %v904, 2147483648
  %v983 = vxor.u32 %v907, 2147483648
  %v984 = vxor.u32 %v912, 2147483648
  %v985 = vxor.u32 %v915, 2147483648
  %v986 = vxor.u32 %v920, 2147483648
  %v987 = vxor.u32 %v923, 2147483648
  %v988 = vxor.u32 %v928, 2147483648
  %v989 = vxor.u32 %v931, 2147483648
  %v990 = vxor.u32 %v936, 2147483648
  %v991 = vxor.u32 %v939, 2147483648
  %v992 = vxor.u32 %v944, 2147483648
  %v993 = vxor.u32 %v947, 2147483648
  %v994 = vxor.u32 %v952, 2147483648
  %v995 = vxor.u32 %v955, 2147483648
  %v996 = vxor.u32 %v960, 2147483648
  %v997 = vxor.u32 %v963, 2147483648
  %v998 = vmul.f32 %v966, 1.442695
  %v999 = vpow.pop %v998
  %v1000 = vmul.f32 %v967, 1.442695
  %v1001 = vpow.pop %v1000
  %v1002 = vmul.f32 %v968, 1.442695
  %v1003 = vpow.pop %v1002
  %v1004 = vmul.f32 %v969, 1.442695
  %v1005 = vpow.pop %v1004
  %v1006 = vmul.f32 %v970, 1.442695
  %v1007 = vpow.pop %v1006
  %v1008 = vmul.f32 %v971, 1.442695
  %v1009 = vpow.pop %v1008
  %v1010 = vmul.f32 %v972, 1.442695
  %v1011 = vpow.pop %v1010
  %v1012 = vmul.f32 %v973, 1.442695
  %v1013 = vpow.pop %v1012
  %v1014 = vmul.f32 %v974, 1.442695
  %v1015 = vpow.pop %v1014
  %v1016 = vmul.f32 %v975, 1.442695
  %v1017 = vpow.pop %v1016
  %v1018 = vmul.f32 %v976, 1.442695
  %v1019 = vpow.pop %v1018
  %v1020 = vmul.f32 %v977, 1.442695
  %v1021 = vpow.pop %v1020
  %v1022 = vmul.f32 %v978, 1.442695
  %v1023 = vpow.pop %v1022
  %v1024 = vmul.f32 %v979, 1.442695
  %v1025 = vpow.pop %v1024
  %v1026 = vmul.f32 %v980, 1.442695
  %v1027 = vpow.pop %v1026
  %v1028 = vmul.f32 %v981, 1.442695
  %v1029 = vpow.pop %v1028
  %v1030 = vmul.f32 %v982, 1.442695
  %v1031 = vpow.pop %v1030
  %v1032 = vmul.f32 %v983, 1.442695
  %v1033 = vpow.pop %v1032
  %v1034 = vmul.f32 %v984, 1.442695
  %v1035 = vpow.pop %v1034
  %v1036 = vmul.f32 %v985, 1.442695
  %v1037 = vpow.pop %v1036
  %v1038 = vmul.f32 %v986, 1.442695
  %v1039 = vpow.pop %v1038
  %v1040 = vmul.f32 %v987, 1.442695
  %v1041 = vpow.pop %v1040
  %v1042 = vmul.f32 %v988, 1.442695
  %v1043 = vpow.pop %v1042
  %v1044 = vmul.f32 %v989, 1.442695
  %v1045 = vpow.pop %v1044
  %v1046 = vmul.f32 %v990, 1.442695
  %v1047 = vpow.pop %v1046
  %v1048 = vmul.f32 %v991, 1.442695
  %v1049 = vpow.pop %v1048
  %v1050 = vmul.f32 %v992, 1.442695
  %v1051 = vpow.pop %v1050
  %v1052 = vmul.f32 %v993, 1.442695
  %v1053 = vpow.pop %v1052
  %v1054 = vmul.f32 %v994, 1.442695
  %v1055 = vpow.pop %v1054
  %v1056 = vmul.f32 %v995, 1.442695
  %v1057 = vpow.pop %v1056
  %v1058 = vmul.f32 %v996, 1.442695
  %v1059 = vpow.pop %v1058
  %v1060 = vmul.f32 %v997, 1.442695
  %v1061 = vpow.pop %v1060
  %v1062 = vadd.f32 %v999, 1.0
  %v1063 = vadd.f32 %v1001, 1.0
  %v1064 = vadd.f32 %v1003, 1.0
  %v1065 = vadd.f32 %v1005, 1.0
  %v1066 = vadd.f32 %v1007, 1.0
  %v1067 = vadd.f32 %v1009, 1.0
  %v1068 = vadd.f32 %v1011, 1.0
  %v1069 = vadd.f32 %v1013, 1.0
  %v1070 = vadd.f32 %v1015, 1.0
  %v1071 = vadd.f32 %v1017, 1.0
  %v1072 = vadd.f32 %v1019, 1.0
  %v1073 = vadd.f32 %v1021, 1.0
  %v1074 = vadd.f32 %v1023, 1.0
  %v1075 = vadd.f32 %v1025, 1.0
  %v1076 = vadd.f32 %v1027, 1.0
  %v1077 = vadd.f32 %v1029, 1.0
  %v1078 = vadd.f32 %v1031, 1.0
  %v1079 = vadd.f32 %v1033, 1.0
  %v1080 = vadd.f32 %v1035, 1.0
  %v1081 = vadd.f32 %v1037, 1.0
  %v1082 = vadd.f32 %v1039, 1.0
  %v1083 = vadd.f32 %v1041, 1.0
  %v1084 = vadd.f32 %v1043, 1.0
  %v1085 = vadd.f32 %v1045, 1.0
  %v1086 = vadd.f32 %v1047, 1.0
  %v1087 = vadd.f32 %v1049, 1.0
  %v1088 = vadd.f32 %v1051, 1.0
  %v1089 = vadd.f32 %v1053, 1.0
  %v1090 = vadd.f32 %v1055, 1.0
  %v1091 = vadd.f32 %v1057, 1.0
  %v1092 = vadd.f32 %v1059, 1.0
  %v1093 = vadd.f32 %v1061, 1.0
  %v1094 = vrcp.pop %v1062
  %v1095 = vmul.f32 1.0, %v1094
  %v1096 = vrcp.pop %v1063
  %v1097 = vmul.f32 1.0, %v1096
  %v1098 = vrcp.pop %v1064
  %v1099 = vmul.f32 1.0, %v1098
  %v1100 = vrcp.pop %v1065
  %v1101 = vmul.f32 1.0, %v1100
  %v1102 = vrcp.pop %v1066
  %v1103 = vmul.f32 1.0, %v1102
  %v1104 = vrcp.pop %v1067
  %v1105 = vmul.f32 1.0, %v1104
  %v1106 = vrcp.pop %v1068
  %v1107 = vmul.f32 1.0, %v1106
  %v1108 = vrcp.pop %v1069
  %v1109 = vmul.f32 1.0, %v1108
  %v1110 = vrcp.pop %v1070
  %v1111 = vmul.f32 1.0, %v1110
  %v1112 = vrcp.pop %v1071
  %v1113 = vmul.f32 1.0, %v1112
  %v1114 = vrcp.pop %v1072
  %v1115 = vmul.f32 1.0, %v1114
  %v1116 = vrcp.pop %v1073
  %v1117 = vmul.f32 1.0, %v1116
  %v1118 = vrcp.pop %v1074
  %v1119 = vmul.f32 1.0, %v1118
  %v1120 = vrcp.pop %v1075
  %v1121 = vmul.f32 1.0, %v1120
  %v1122 = vrcp.pop %v1076
  %v1123 = vmul.f32 1.0, %v1122
  %v1124 = vrcp.pop %v1077
  %v1125 = vmul.f32 1.0, %v1124
  %v1126 = vrcp.pop %v1078
  %v1127 = vmul.f32 1.0, %v1126
  %v1128 = vrcp.pop %v1079
  %v1129 = vmul.f32 1.0, %v1128
  %v1130 = vrcp.pop %v1080
  %v1131 = vmul.f32 1.0, %v1130
  %v1132 = vrcp.pop %v1081
  %v1133 = vmul.f32 1.0, %v1132
  %v1134 = vrcp.pop %v1082
  %v1135 = vmul.f32 1.0, %v1134
  %v1136 = vrcp.pop %v1083
  %v1137 = vmul.f32 1.0, %v1136
  %v1138 = vrcp.pop %v1084
  %v1139 = vmul.f32 1.0, %v1138
  %v1140 = vrcp.pop %v1085
  %v1141 = vmul.f32 1.0, %v1140
  %v1142 = vrcp.pop %v1086
  %v1143 = vmul.f32 1.0, %v1142
  %v1144 = vrcp.pop %v1087
  %v1145 = vmul.f32 1.0, %v1144
  %v1146 = vrcp.pop %v1088
  %v1147 = vmul.f32 1.0, %v1146
  %v1148 = vrcp.pop %v1089
  %v1149 = vmul.f32 1.0, %v1148
  %v1150 = vrcp.pop %v1090
  %v1151 = vmul.f32 1.0, %v1150
  %v1152 = vrcp.pop %v1091
  %v1153 = vmul.f32 1.0, %v1152
  %v1154 = vrcp.pop %v1092
  %v1155 = vmul.f32 1.0, %v1154
  %v1156 = vrcp.pop %v1093
  %v1157 = vmul.f32 1.0, %v1156
  %1158 = vst [vmem:[%s5] sm:$0xff] %v1095
  %1159 = vst [vmem:[%s5 + $0x8] sm:$0xff] %v1097
  %1160 = vst [vmem:[%s5 + $0x10] sm:$0xff] %v1099
  %1161 = vst [vmem:[%s5 + $0x18] sm:$0xff] %v1101
  %1162 = vst [vmem:[%s5 + $0x20] sm:$0xff] %v1103
  %1163 = vst [vmem:[%s5 + $0x28] sm:$0xff] %v1105
  %1164 = vst [vmem:[%s5 + $0x30] sm:$0xff] %v1107
  %1165 = vst [vmem:[%s5 + $0x38] sm:$0xff] %v1109
  %1166 = vst [vmem:[%s5 + $0x40] sm:$0xff] %v1111
  %1167 = vst [vmem:[%s5 + $0x48] sm:$0xff] %v1113
  %1168 = vst [vmem:[%s5 + $0x50] sm:$0xff] %v1115
  %1169 = vst [vmem:[%s5 + $0x58] sm:$0xff] %v1117
  %1170 = vst [vmem:[%s5 + $0x60] sm:$0xff] %v1119
  %1171 = vst [vmem:[%s5 + $0x68] sm:$0xff] %v1121
  %1172 = vst [vmem:[%s5 + $0x70] sm:$0xff] %v1123
  %1173 = vst [vmem:[%s5 + $0x78] sm:$0xff] %v1125
  %1174 = vst [vmem:[%s5 + $0x80] sm:$0xff] %v1127
  %1175 = vst [vmem:[%s5 + $0x88] sm:$0xff] %v1129
  %1176 = vst [vmem:[%s5 + $0x90] sm:$0xff] %v1131
  %1177 = vst [vmem:[%s5 + $0x98] sm:$0xff] %v1133
  %1178 = vst [vmem:[%s5 + $0xa0] sm:$0xff] %v1135
  %1179 = vst [vmem:[%s5 + $0xa8] sm:$0xff] %v1137
  %1180 = vst [vmem:[%s5 + $0xb0] sm:$0xff] %v1139
  %1181 = vst [vmem:[%s5 + $0xb8] sm:$0xff] %v1141
  %1182 = vst [vmem:[%s5 + $0xc0] sm:$0xff] %v1143
  %1183 = vst [vmem:[%s5 + $0xc8] sm:$0xff] %v1145
  %1184 = vst [vmem:[%s5 + $0xd0] sm:$0xff] %v1147
  %1185 = vst [vmem:[%s5 + $0xd8] sm:$0xff] %v1149
  %1186 = vst [vmem:[%s5 + $0xe0] sm:$0xff] %v1151
  %1187 = vst [vmem:[%s5 + $0xe8] sm:$0xff] %v1153
  %1188 = vst [vmem:[%s5 + $0xf0] sm:$0xff] %v1155
  %1189 = vst [vmem:[%s5 + $0xf8] sm:$0xff] %v1157
  // Predicated region
  $region22: #{forward.1} parent=0 // pred_check
    _
  $region23: #{forward.1} parent=0 // pred_check_branch
    %1191 = sbr.rel (0) target = $region25
  $region24: #{forward.1} parent=0 // pred_region
    _
  $region25: #{forward.1} parent=0 // pred_fallthru
    _
  // Predicated region
  $region26: #{forward.1} parent=0 // pred_check
    _
  $region27: #{forward.1} parent=0 // pred_check_branch
    %1193 = sbr.rel (0) target = $region29
  $region28: #{forward.1} parent=0 // pred_region
    _
  $region29: #{forward.1} parent=0 // pred_fallthru
    _

</llo_original>
